<compile_context>
chip_gen: v7x
topology: tpu7x:2x2x1
jax: 0.10.0
libtpu: 0.0.40
codegen_flags: <defaults>
</compile_context>

<pallas_src>
import functools

import numpy as np
import jax
import jax.numpy as jnp
from jax.experimental import pallas as pl
from jax.experimental.pallas import tpu as pltpu

_LANE = 128               # lane width of the flattened layout (full vreg width)
_MAX_BLOCK_ROWS = 4096    # 4096 rows x 128 lanes x 4 B = 2 MiB per block


def _mixup_kernel(coef_ref, x_ref, z_ref, o_ref, *, use_log):
    # coef_ref: (2,) f32 in SMEM: [a, 1 - a] with a = 1 - alpha (weight on x).
    # x_ref:    (tb, tr, 128) VMEM tile spanning tb batch elements.
    # z_ref:    (tr, 128)     VMEM tile of the bank sample (broadcast over the
    #                         batch; constant along the inner batch grid axis,
    #                         so it is fetched once per row tile).
    a = coef_ref[0]       # 1 - alpha (weight on x)
    na = coef_ref[1]      # alpha     (weight on z)
    x = x_ref[...]
    z = z_ref[...][None]  # broadcast over the batch-tile axis
    if use_log:
        eps = jnp.finfo(jnp.float32).eps
        # Stabilized log-mixup-exp: 1 exp + 1 log per element (EUP), rest VPU.
        d = x - z
        e = jnp.exp(-jnp.abs(d))
        m = jnp.maximum(x, z)
        w = jnp.where(d >= 0, a + na * e, a * e + na)
        o_ref[...] = m + jnp.log(w + eps)
    else:
        # plain mixup: alpha * z + (1 - alpha) * x
        o_ref[...] = a * x + na * z


def _largest_divisor_le(n, cap):
    cap = max(1, min(n, cap))
    for d in range(cap, 0, -1):
        if n % d == 0:
            return d
    return 1


@functools.partial(jax.jit, static_argnames=("use_log",))
def _mixup_pallas(x, z, coefs, *, use_log):
    """x: (B, C, F, T); z: (C, F, T); coefs: (2,) f32 = [1-alpha, alpha]."""
    B, C, F, T = x.shape
    P = C * F * T

    # Lane-dense layout: flatten each sample to rows of 128 f32 lanes.
    rows = -(-P // _LANE)                             # cdiv(P, 128)
    n_row_tiles = -(-rows // _MAX_BLOCK_ROWS)         # row tiles per sample
    tr = ((-(-rows // n_row_tiles) + 7) // 8) * 8     # rows/tile, multiple of 8
    R = tr * n_row_tiles
    Pp = R * _LANE

    # Pack several batch elements per block so every block is ~2 MiB even when
    # one sample is small; tb divides B so the grid is exact (no masked tiles).
    tb = _largest_divisor_le(B, _MAX_BLOCK_ROWS // tr) if n_row_tiles == 1 else 1

    x2 = x.reshape(B, P).astype(jnp.float32)
    z1 = z.reshape(P).astype(jnp.float32)
    if Pp != P:
        # TODO(synk): this padding is an extra HBM copy; typical BYOL-A shapes
        # (C*F*T a multiple of 1024) take the copy-free path.
        x2 = jnp.pad(x2, ((0, 0), (0, Pp - P)))
        z1 = jnp.pad(z1, (0, Pp - P))
    x3 = x2.reshape(B, R, _LANE)
    z2 = z1.reshape(R, _LANE)

    kernel = functools.partial(_mixup_kernel, use_log=use_log)

    out = pl.pallas_call(
        kernel,
        out_shape=jax.ShapeDtypeStruct((B, R, _LANE), jnp.float32),
        grid_spec=pl.GridSpec(
            # Inner-most (fastest) axis is the batch-tile; z's block index does
            # not depend on it, so the bank sample stays resident in VMEM.
            grid=(n_row_tiles, B // tb),
            in_specs=[
                # mix coefficients, whole (2,) array in SMEM
                pl.BlockSpec(memory_space=pltpu.MemorySpace.SMEM),
                # x tile: tb batch elements, tr rows, 128 lanes
                pl.BlockSpec((tb, tr, _LANE), lambda i, b: (b, i, 0)),
                # z tile: same rows, batch axis ignored (broadcast)
                pl.BlockSpec((tr, _LANE), lambda i, b: (i, 0)),
            ],
            out_specs=pl.BlockSpec((tb, tr, _LANE), lambda i, b: (b, i, 0)),
        ),
        compiler_params=pltpu.CompilerParams(
            dimension_semantics=("parallel", "parallel")
        ),
    )(coefs, x3, z2)

    return out.reshape(B, Pp)[:, :P].reshape(B, C, F, T)


class MixupBYOLA:
    """JAX/Pallas port of the BYOL-A Mixup module (host-side memory bank)."""

    def __init__(self, ratio=0.2, n_memory=2048, log_mixup_exp=True, seed=0):
        self.ratio = ratio
        self.n = n_memory
        self.log_mixup_exp = log_mixup_exp
        self.memory_bank = []
        # deterministic replacement for np.random.* in the original module
        self._rng = np.random.RandomState(seed)

    def __call__(self, x):
        alpha = self.ratio * float(self._rng.random_sample())
        if self.memory_bank:
            z = self.memory_bank[int(self._rng.randint(len(self.memory_bank)))]
            coefs = jnp.asarray([1.0 - alpha, alpha], dtype=jnp.float32)
            mixed = _mixup_pallas(x, z, coefs, use_log=self.log_mixup_exp)
        else:
            mixed = x
        # FIFO memory bank of individual samples (shape (C, F, T) each)
        # TODO(synk): bank entries stay as device arrays; no Pallas equivalent
        # for the host-side FIFO/RNG bookkeeping.
        self.memory_bank = (self.memory_bank + [x[i] for i in range(x.shape[0])])[-self.n:]
        return mixed.astype(jnp.float32)

    def __repr__(self):
        return (f"{self.__class__.__name__}(ratio={self.ratio},n={self.n}"
                f",log_mixup_exp={self.log_mixup_exp})")


def _reference_log_mixup_exp(x, z, a):
    eps = jnp.finfo(jnp.float32).eps
    return jnp.log(a * jnp.exp(x) + (1.0 - a) * jnp.exp(z[None]) + eps)


if __name__ == "__main__":
    key = jax.random.PRNGKey(0)
    k1, k2 = jax.random.split(key)
    B, C, F, T = 2, 4, 16, 16
    # log-mel-spectrogram-like inputs (log scale, so values can be negative)
    x1 = jax.random.normal(k1, (B, C, F, T), dtype=jnp.float32)
    x2 = jax.random.normal(k2, (B, C, F, T), dtype=jnp.float32)

    # ---- log-mixup-exp branch ------------------------------------------------
    mixer = MixupBYOLA(ratio=0.2, n_memory=2048, log_mixup_exp=True, seed=0)

    # First call: memory bank is empty -> passthrough (fills the bank).
    out1 = mixer(x1)
    jax.block_until_ready(out1)
    assert out1.shape == (B, C, F, T) and out1.dtype == jnp.float32

    # Reproduce the RNG draws the mixer will make so we can verify numerically.
    rng_check = np.random.RandomState(0)
    rng_check.random_sample()                       # consumed by first call
    alpha_chk = 0.2 * float(rng_check.random_sample())
    z_idx = int(rng_check.randint(len(mixer.memory_bank)))
    z_chk = mixer.memory_bank[z_idx]

    out2 = mixer(x2)
    jax.block_until_ready(out2)
    assert out2.shape == (B, C, F, T) and out2.dtype == jnp.float32

    ref = _reference_log_mixup_exp(x2, z_chk, 1.0 - alpha_chk)
    np.testing.assert_allclose(np.asarray(out2), np.asarray(ref),
                               rtol=1e-5, atol=1e-5)

    # ---- plain-mixup branch --------------------------------------------------
    mixer_lin = MixupBYOLA(ratio=0.2, n_memory=2048, log_mixup_exp=False, seed=1)
    _ = mixer_lin(x1)                               # passthrough, fill bank
    rng_check2 = np.random.RandomState(1)
    rng_check2.random_sample()
    alpha2 = 0.2 * float(rng_check2.random_sample())
    z_idx2 = int(rng_check2.randint(len(mixer_lin.memory_bank)))
    z_chk2 = mixer_lin.memory_bank[z_idx2]

    out_lin = mixer_lin(x2)
    jax.block_until_ready(out_lin)
    ref_lin = alpha2 * z_chk2[None] + (1.0 - alpha2) * x2
    np.testing.assert_allclose(np.asarray(out_lin), np.asarray(ref_lin),
                               rtol=1e-5, atol=1e-5)

    print("KERNEL_OK")
</pallas_src>

<mosaic_0001>
module attributes {stable_mosaic.version = 11 : i64} {
  func.func @_mixup_kernel(%arg0: i32, %arg1: i32, %arg2: memref<2xf32, #tpu.memory_space<smem>>, %arg3: memref<2x8x128xf32, #tpu.memory_space<vmem>>, %arg4: memref<8x128xf32, #tpu.memory_space<vmem>>, %arg5: memref<2x8x128xf32, #tpu.memory_space<vmem>>) attributes {dimension_semantics = [#tpu.dimension_semantics<parallel>, #tpu.dimension_semantics<parallel>], iteration_bounds = array<i64: 1, 1>, scalar_prefetch = 0 : i64, scratch_operands = 0 : i64, tpu.core_type = #tpu.core_type<tc>, window_params = [{transform_indices = @transform_0, window_bounds = array<i64: 2>}, {transform_indices = @transform_1, window_bounds = array<i64: 2, 8, 128>}, {transform_indices = @transform_2, window_bounds = array<i64: 8, 128>}, {transform_indices = @transform_3, window_bounds = array<i64: 2, 8, 128>}]} {
    %c0 = arith.constant 0 : index
    %0 = memref.load %arg2[%c0] : memref<2xf32, #tpu.memory_space<smem>>
    %c1 = arith.constant 1 : index
    %1 = memref.load %arg2[%c1] : memref<2xf32, #tpu.memory_space<smem>>
    %c0_0 = arith.constant 0 : index
    %c0_1 = arith.constant 0 : index
    %c0_2 = arith.constant 0 : index
    %2 = vector.load %arg3[%c0_0, %c0_1, %c0_2] : memref<2x8x128xf32, #tpu.memory_space<vmem>>, vector<2x8x128xf32>
    %c0_3 = arith.constant 0 : index
    %c0_4 = arith.constant 0 : index
    %3 = vector.load %arg4[%c0_3, %c0_4] : memref<8x128xf32, #tpu.memory_space<vmem>>, vector<8x128xf32>
    %4 = vector.shape_cast %3 : vector<8x128xf32> to vector<1x8x128xf32>
    %5 = vector.broadcast %4 : vector<1x8x128xf32> to vector<2x8x128xf32>
    %6 = arith.subf %2, %5 : vector<2x8x128xf32>
    %7 = math.absf %6 : vector<2x8x128xf32>
    %cst = arith.constant 0.000000e+00 : f32
    %8 = vector.broadcast %cst : f32 to vector<2x8x128xf32>
    %9 = arith.subf %8, %7 : vector<2x8x128xf32>
    %10 = math.exp %9 : vector<2x8x128xf32>
    %11 = vector.broadcast %4 : vector<1x8x128xf32> to vector<2x8x128xf32>
    %12 = arith.maximumf %2, %11 : vector<2x8x128xf32>
    %cst_5 = arith.constant 0.000000e+00 : f32
    %13 = vector.broadcast %cst_5 : f32 to vector<2x8x128xf32>
    %14 = arith.cmpf oge, %6, %13 : vector<2x8x128xf32>
    %15 = vector.broadcast %1 : f32 to vector<2x8x128xf32>
    %16 = arith.mulf %15, %10 : vector<2x8x128xf32>
    %17 = vector.broadcast %0 : f32 to vector<2x8x128xf32>
    %18 = arith.addf %17, %16 : vector<2x8x128xf32>
    %19 = vector.broadcast %0 : f32 to vector<2x8x128xf32>
    %20 = arith.mulf %19, %10 : vector<2x8x128xf32>
    %21 = vector.broadcast %1 : f32 to vector<2x8x128xf32>
    %22 = arith.addf %20, %21 : vector<2x8x128xf32>
    %23 = arith.select %14, %18, %22 : vector<2x8x128xi1>, vector<2x8x128xf32>
    %cst_6 = arith.constant 1.1920929E-7 : f32
    %24 = vector.broadcast %cst_6 : f32 to vector<2x8x128xf32>
    %25 = arith.addf %23, %24 : vector<2x8x128xf32>
    %26 = math.log %25 : vector<2x8x128xf32>
    %27 = arith.addf %12, %26 : vector<2x8x128xf32>
    %c0_7 = arith.constant 0 : index
    %c0_8 = arith.constant 0 : index
    %c0_9 = arith.constant 0 : index
    %28 = vector.load %arg5[%c0_7, %c0_8, %c0_9] : memref<2x8x128xf32, #tpu.memory_space<vmem>>, vector<2x8x128xf32>
    tpu.vector_store %arg5[%c0_7, %c0_8, %c0_9], %27 {strides = array<i32>} : memref<2x8x128xf32, #tpu.memory_space<vmem>>, vector<2x8x128xf32>,
    return
  }
  func.func @transform_0(%arg0: i32, %arg1: i32) -> i32 {
    %c0_i32 = arith.constant 0 : i32
    %c0_i32_0 = arith.constant 0 : i32
    return %c0_i32 : i32
  }
  func.func @transform_1(%arg0: i32, %arg1: i32) -> (i32, i32, i32) {
    %c0_i32 = arith.constant 0 : i32
    %c0_i32_0 = arith.constant 0 : i32
    return %arg1, %arg0, %c0_i32 : i32, i32, i32
  }
  func.func @transform_2(%arg0: i32, %arg1: i32) -> (i32, i32) {
    %c0_i32 = arith.constant 0 : i32
    %c0_i32_0 = arith.constant 0 : i32
    return %arg0, %c0_i32 : i32, i32
  }
  func.func @transform_3(%arg0: i32, %arg1: i32) -> (i32, i32, i32) {
    %c0_i32 = arith.constant 0 : i32
    %c0_i32_0 = arith.constant 0 : i32
    return %arg1, %arg0, %c0_i32 : i32, i32, i32
  }
}

</mosaic_0001>

<llo_original>
// kernel: _mixup_pallas.1
$region0: #{_mixup_pallas.1}
  #allocation0 [shape = 'u32[]', space=smem, size = 0x4, offset = 0x4, fixed_abs, tag = 'smem constant byte address 0x4 - core index']
  #allocation1 [shape = 'u32[144,128]{1,0:T(1,128)}', space=vmem, size = 0x12000, scoped, tag = 'internal scratch']
  %s0 = inlined_call_operand.vmem [shape: f32[2], index: 0, kind: input, shape index: {}]
  %s1 = inlined_call_operand.vmem [shape: f32[2,8,128], index: 1, kind: input, shape index: {}]
  %s2 = inlined_call_operand.vmem [shape: f32[8,128], index: 2, kind: input, shape index: {}]
  %s3 = inlined_call_operand.vmem [shape: f32[2,8,128], index: 3, kind: output, shape index: {}]
  %s4 = sld [smem:[#allocation0]]
  $region26: #{_mixup_pallas.1} parent=0
    _
  %s6 = ssub.s32 1, %s4
  %s7 = scalar_select 0, %s6, %s4
  $region1: #{_mixup_pallas.1} parent=0
    #allocation2 [shape = 'u8[512]{0}', space=smem, size = 0x200, scoped, tag = 'input window, operand 0, single buffered']
    #allocation3 [shape = 's32[1]{0}', space=sflag, size = 0x4, scoped, tag = 'scoped memory for _mixup_pallas.1']
    %8 = vsyncpa [#allocation3], 0
    // Predicated region
    $region2: #{_mixup_pallas.1} parent=1 // pred_check
      _
    $region3: #{_mixup_pallas.1} parent=1 // pred_check_branch
      %10 = sbr.rel (0) target = $region5
    $region4: #{_mixup_pallas.1} parent=1 // pred_region
      %s12 = ssub.s32 16, 16
      %13 = vsyncadd [#allocation3], %s12
      %s15 = sshll.u32 %s0, 4
      %s16 = int_to_ptr.vmem [resolvable:$true] %s15
      %18 = dma.vmem_to_smem %s16, 16, [#allocation2], [#allocation3]
    $region5: #{_mixup_pallas.1} parent=1 // pred_fallthru
      _
    // Predicated region
    $region6: #{_mixup_pallas.1} parent=1 // pred_check
      _
    $region7: #{_mixup_pallas.1} parent=1 // pred_check_branch
      %20 = sbr.rel (0) target = $region9
    $region8: #{_mixup_pallas.1} parent=1 // pred_region
      _
    $region9: #{_mixup_pallas.1} parent=1 // pred_fallthru
      _
    // Predicated region
    $region10: #{_mixup_pallas.1} parent=1 // pred_check
      _
    $region11: #{_mixup_pallas.1} parent=1 // pred_check_branch
      %22 = sbr.rel (0) target = $region13
    $region12: #{_mixup_pallas.1} parent=1 // pred_region
      _
    $region13: #{_mixup_pallas.1} parent=1 // pred_fallthru
      _
    // Predicated region
    $region14: #{_mixup_pallas.1} parent=1 // pred_check
      _
    $region15: #{_mixup_pallas.1} parent=1 // pred_check_branch
      %24 = sbr.rel (0) target = $region17
    $region16: #{_mixup_pallas.1} parent=1 // pred_region
      %25 = dma.done [#allocation3], 16
    $region17: #{_mixup_pallas.1} parent=1 // pred_fallthru
      _
    %26 = sfence
    %s27 = sld [smem:[#allocation2]]
    %s28 = sld [smem:[#allocation2 + $0x1]]
    %v29 = vld [vmem:[%s1] sm:$0xff]
    %v30 = vld [vmem:[%s1 + $0x8] sm:$0xff]
    %v31 = vld [vmem:[%s2] sm:$0xff]
    %v32 = vsub.f32 %v29, %v31
    %v33 = vsub.f32 %v30, %v31
    %v34 = vand.u32 2147483647, %v32
    %v35 = vand.u32 2147483647, %v33
    %v36 = vsub.f32 0.0, %v34
    %v37 = vsub.f32 0.0, %v35
    %v38 = vmul.f32 %v36, 1.442695
    %v39 = vpow.pop %v38
    %v40 = vmul.f32 %v37, 1.442695
    %v41 = vpow.pop %v40
    %v42 = vmax.f32 %v29, %v31
    %v43 = vmax.f32 %v30, %v31
    %vm44 = vcmp.ge.f32.partialorder %v32, 0.0
    %vm45 = vcmp.ge.f32.partialorder %v33, 0.0
    %v46 = vstv %s28
    %v47 = vmul.f32 %v46, %v39
    %v48 = vmul.f32 %v46, %v41
    %v49 = vstv %s27
    %v50 = vadd.f32 %v49, %v47
    %v51 = vadd.f32 %v49, %v48
    %v52 = vmul.f32 %v49, %v39
    %v53 = vmul.f32 %v49, %v41
    %v54 = vadd.f32 %v52, %v46
    %v55 = vadd.f32 %v53, %v46
    %v56 = vsel %vm44, %v50, %v54
    %v57 = vsel %vm45, %v51, %v55
    %v58 = vadd.f32 %v56, 1.1920929e-07
    %v59 = vadd.f32 %v57, 1.1920929e-07
    %v60 = vlog2.pop %v58
    %v61 = vmul.f32 %v60, 0.6931472
    %v62 = vlog2.pop %v59
    %v63 = vmul.f32 %v62, 0.6931472
    %v64 = vadd.f32 %v42, %v61
    %v65 = vadd.f32 %v43, %v63
    %66 = vst [vmem:[%s3] sm:$0xff] %v64
    %67 = vst [vmem:[%s3 + $0x8] sm:$0xff] %v65
    // Predicated region
    $region18: #{_mixup_pallas.1} parent=1 // pred_check
      _
    $region19: #{_mixup_pallas.1} parent=1 // pred_check_branch
      %69 = sbr.rel (0) target = $region21
    $region20: #{_mixup_pallas.1} parent=1 // pred_region
      _
    $region21: #{_mixup_pallas.1} parent=1 // pred_fallthru
      _
    // Predicated region
    $region22: #{_mixup_pallas.1} parent=1 // pred_check
      _
    $region23: #{_mixup_pallas.1} parent=1 // pred_check_branch
      %71 = sbr.rel (0) target = $region25
    $region24: #{_mixup_pallas.1} parent=1 // pred_region
      _
    $region25: #{_mixup_pallas.1} parent=1 // pred_fallthru
      _
    %72 = vsyncpa [#allocation3], 1

</llo_original>
